<compile_context>
chip_gen: v7x
topology: tpu7x:2x2x1
jax: 0.10.0
libtpu: 0.0.40
codegen_flags: <defaults>
</compile_context>

<pallas_src>
import functools

import numpy as np
import jax
import jax.numpy as jnp
from jax.experimental import pallas as pl
from jax.experimental.pallas import tpu as pltpu


def seem_kernel(x1_ref, x2_ref, w1_ref, b1_ref, w2_ref, b2_ref, wr_ref,
                out_ref, *, l_valid):
    # x1_ref: (B, C1, Lp)   x2_ref: (B, C2, Lp)   out_ref: (B, C1, Lp)
    # w1_ref: (C1, C1)  b1_ref: (C1, 1)   (fused 1x1 conv + eval-mode BN)
    # w2_ref: (C2, C2)  b2_ref: (C2, 1)
    # wr_ref: (1, C2)                     (dim_reduce Conv1d weight, no bias)
    w1 = w1_ref[...]
    b1 = b1_ref[...]
    w2 = w2_ref[...]
    b2 = b2_ref[...]
    wr = wr_ref[...]

    bsz, _, lp = x1_ref.shape
    need_mask = lp != l_valid            # static (trace-time) decision
    if need_mask:
        lane = jax.lax.broadcasted_iota(jnp.int32, (1, lp), 1)
        lane_mask = lane < l_valid

    # Static unroll over the per-step batch block (B is small); each iteration
    # is a pair of 2-D channel matmuls with L (the lane axis) as the free dim.
    for b in range(bsz):
        x1 = x1_ref[b].astype(jnp.float32)            # (C1, Lp)
        x2 = x2_ref[b].astype(jnp.float32)            # (C2, Lp)

        # fused 1x1 conv + BN + sigmoid  (pointwise conv == channel matmul)
        t1 = jax.nn.sigmoid(
            jnp.dot(w1, x1, preferred_element_type=jnp.float32) + b1)   # (C1, Lp)
        t2 = jax.nn.sigmoid(
            jnp.dot(w2, x2, preferred_element_type=jnp.float32) + b2)   # (C2, Lp)

        # dim_reduce folded into the spatial reduction:
        #   scale[c1] = sum_c2 wr[c2] * sum_l t1[c1,l]*t2[c2,l]
        #             = sum_l t1[c1,l] * (wr @ t2)[l]
        v = jnp.dot(wr, t2, preferred_element_type=jnp.float32)         # (1, Lp)
        if need_mask:
            v = jnp.where(lane_mask, v, 0.0)   # zero padded spatial columns
        scale = jnp.sum(t1 * v, axis=-1, keepdims=True)                 # (C1, 1)

        out_ref[b] = (x1 * scale).astype(out_ref.dtype)


def _pick_batch_block(n, c1, c2, lp, itemsize, target_bytes=4 << 20, max_b=8):
    """Largest B <= max_b dividing n with (x1 + x2 + out) block <= target_bytes."""
    per_sample = (2 * c1 + c2) * lp * itemsize
    b = int(max(1, min(n, max_b, target_bytes // max(per_sample, 1))))
    while n % b:
        b -= 1
    return b


def spectral_enhance_forward(x1, x2, params, *, batch_block=None):
    """x1: (N, C1, H, W), x2: (N, C2, H, W) -> (N, C1, H, W)."""
    n, c1, h, w = x1.shape
    n2, c2, h2, w2 = x2.shape
    assert n == n2 and (h, w) == (h2, w2), "matching batch / spatial extents required"
    l = h * w
    lp = ((l + 127) // 128) * 128          # lane-dense last dim

    x1f = x1.reshape(n, c1, l)
    x2f = x2.reshape(n, c2, l)
    if lp != l:
        x1f = jnp.pad(x1f, ((0, 0), (0, 0), (0, lp - l)))
        x2f = jnp.pad(x2f, ((0, 0), (0, 0), (0, lp - l)))

    itemsize = jnp.dtype(x1.dtype).itemsize
    bb = batch_block if batch_block is not None else _pick_batch_block(
        n, c1, c2, lp, itemsize)
    assert n % bb == 0, "batch_block must divide N"

    w1, b1 = params["w1_eff"], params["b1_eff"]      # (C1, C1), (C1, 1)
    w2, b2 = params["w2_eff"], params["b2_eff"]      # (C2, C2), (C2, 1)
    wr = params["w_reduce"]                          # (1, C2)

    # VMEM budget: double-buffered x1/x2/out blocks + resident weights + f32 temps.
    est = (2 * bb * (2 * c1 + c2) * lp * itemsize
           + 2 * (c1 * c1 + c1 + c2 * c2 + 2 * c2) * 4
           + 6 * max(c1, c2) * lp * 4)
    vmem_limit = int(min(max(2 * est, 32 << 20), 100 << 20))

    out = pl.pallas_call(
        functools.partial(seem_kernel, l_valid=l),
        out_shape=jax.ShapeDtypeStruct((n, c1, lp), x1.dtype),
        grid_spec=pltpu.PrefetchScalarGridSpec(
            num_scalar_prefetch=0,
            grid=(n // bb,),
            in_specs=[
                pl.BlockSpec((bb, c1, lp), lambda i: (i, 0, 0)),
                pl.BlockSpec((bb, c2, lp), lambda i: (i, 0, 0)),
                # constant index maps -> Pallas keeps these resident, no re-DMA
                pl.BlockSpec((c1, c1), lambda i: (0, 0)),
                pl.BlockSpec((c1, 1), lambda i: (0, 0)),
                pl.BlockSpec((c2, c2), lambda i: (0, 0)),
                pl.BlockSpec((c2, 1), lambda i: (0, 0)),
                pl.BlockSpec((1, c2), lambda i: (0, 0)),
            ],
            out_specs=pl.BlockSpec((bb, c1, lp), lambda i: (i, 0, 0)),
        ),
        compiler_params=pltpu.CompilerParams(
            dimension_semantics=("parallel",),   # batch axis: megacore-shardable
            vmem_limit_bytes=vmem_limit,
        ),
    )(x1f, x2f, w1, b1, w2, b2, wr)

    if lp != l:
        out = out[:, :, :l]
    return out.reshape(n, c1, h, w)


def make_params(key, c1, c2, eps=1e-5):
    """Deterministic synthetic parameters; fuses 1x1 conv + eval-mode BN."""
    ks = jax.random.split(key, 13)

    def fused(kw, kb, kg, kbeta, km, kv, c_in, c_out):
        conv_w = jax.random.normal(kw, (c_out, c_in), jnp.float32) * 0.2
        conv_b = jax.random.normal(kb, (c_out,), jnp.float32) * 0.1
        gamma = 1.0 + 0.3 * jax.random.normal(kg, (c_out,), jnp.float32)
        beta = 0.1 * jax.random.normal(kbeta, (c_out,), jnp.float32)
        r_mean = 0.1 * jax.random.normal(km, (c_out,), jnp.float32)
        r_var = jax.random.uniform(kv, (c_out,), jnp.float32, 0.5, 1.5)
        scale = gamma / jnp.sqrt(r_var + eps)
        shift = beta - r_mean * scale
        return conv_w * scale[:, None], (conv_b * scale + shift)[:, None]

    w1_eff, b1_eff = fused(*ks[0:6], c1, c1)
    w2_eff, b2_eff = fused(*ks[6:12], c2, c2)
    w_reduce = jax.random.normal(ks[12], (1, c2), jnp.float32) * 0.3
    # NOTE: self.g / self.W_z are defined in __init__ but unused in forward.
    return {"w1_eff": w1_eff, "b1_eff": b1_eff,
            "w2_eff": w2_eff, "b2_eff": b2_eff,
            "w_reduce": w_reduce}


def reference_forward(x1, x2, params):
    """Pure-JAX reference mirroring the PyTorch forward (full affinity path)."""
    n, c1, h, w = x1.shape
    c2 = x2.shape[1]
    l = h * w
    t1 = jax.nn.sigmoid(
        jnp.einsum("oc,ncl->nol", params["w1_eff"], x1.reshape(n, c1, l))
        + params["b1_eff"][None])
    t2 = jax.nn.sigmoid(
        jnp.einsum("oc,ncl->nol", params["w2_eff"], x2.reshape(n, c2, l))
        + params["b2_eff"][None])
    affinity = jnp.einsum("nal,nbl->nab", t1, t2)                      # (N, C1, C2)
    scale = jnp.einsum("nab,b->na", affinity, params["w_reduce"][0])   # (N, C1)
    return x1 * scale[:, :, None, None]


if __name__ == "__main__":
    key = jax.random.PRNGKey(0)
    ks = jax.random.split(key, 9)

    def run_case(n, c1, c2, h, w, dtype, rtol, atol, kp, kx1, kx2):
        x1 = jax.random.normal(kx1, (n, c1, h, w), jnp.float32)
        x2 = jax.random.normal(kx2, (n, c2, h, w), jnp.float32)
        params = make_params(kp, c1, c2)
        x1c = x1.astype(dtype)
        x2c = x2.astype(dtype)
        out = jax.block_until_ready(spectral_enhance_forward(x1c, x2c, params))
        ref = jax.block_until_ready(
            reference_forward(x1c.astype(jnp.float32), x2c.astype(jnp.float32), params))
        np.testing.assert_allclose(np.asarray(out.astype(jnp.float32)),
                                   np.asarray(ref), rtol=rtol, atol=atol)

    # f32, L = 256 (already lane-dense), whole batch in one grid step (B = 2)
    run_case(2, 4, 6, 16, 16, jnp.float32, 1e-4, 1e-4, ks[0], ks[1], ks[2])
    # f32, odd spatial extent: L = 25 -> padded to 128, masked L-reduction
    run_case(3, 4, 6, 5, 5, jnp.float32, 1e-4, 1e-4, ks[3], ks[4], ks[5])
    # bf16 I/O (halves HBM traffic on v6e/v7x); in-kernel compute stays f32
    run_case(2, 4, 6, 16, 16, jnp.bfloat16, 2e-2, 2e-2, ks[6], ks[7], ks[8])

    print("KERNEL_OK")
</pallas_src>

<mosaic_0001>
module attributes {stable_mosaic.version = 11 : i64} {
  func.func @seem_kernel(%arg0: i32, %arg1: memref<2x4x256xf32, #tpu.memory_space<vmem>>, %arg2: memref<2x6x256xf32, #tpu.memory_space<vmem>>, %arg3: memref<4x4xf32, #tpu.memory_space<vmem>>, %arg4: memref<4x1xf32, #tpu.memory_space<vmem>>, %arg5: memref<6x6xf32, #tpu.memory_space<vmem>>, %arg6: memref<6x1xf32, #tpu.memory_space<vmem>>, %arg7: memref<1x6xf32, #tpu.memory_space<vmem>>, %arg8: memref<2x4x256xf32, #tpu.memory_space<vmem>>) attributes {dimension_semantics = [#tpu.dimension_semantics<parallel>], iteration_bounds = array<i64: 1>, scalar_prefetch = 0 : i64, scratch_operands = 0 : i64, tpu.core_type = #tpu.core_type<tc>, window_params = [{transform_indices = @transform_0, window_bounds = array<i64: 2, 4, 256>}, {transform_indices = @transform_1, window_bounds = array<i64: 2, 6, 256>}, {pipeline_mode = #tpu.pipeline_mode<synchronous>, transform_indices = @transform_2, window_bounds = array<i64: 4, 4>}, {pipeline_mode = #tpu.pipeline_mode<synchronous>, transform_indices = @transform_3, window_bounds = array<i64: 4, 1>}, {pipeline_mode = #tpu.pipeline_mode<synchronous>, transform_indices = @transform_4, window_bounds = array<i64: 6, 6>}, {pipeline_mode = #tpu.pipeline_mode<synchronous>, transform_indices = @transform_5, window_bounds = array<i64: 6, 1>}, {pipeline_mode = #tpu.pipeline_mode<synchronous>, transform_indices = @transform_6, window_bounds = array<i64: 1, 6>}, {transform_indices = @transform_7, window_bounds = array<i64: 2, 4, 256>}]} {
    %c0 = arith.constant 0 : index
    %c0_0 = arith.constant 0 : index
    %0 = vector.load %arg3[%c0, %c0_0] : memref<4x4xf32, #tpu.memory_space<vmem>>, vector<4x4xf32>
    %c0_1 = arith.constant 0 : index
    %c0_2 = arith.constant 0 : index
    %1 = vector.load %arg4[%c0_1, %c0_2] : memref<4x1xf32, #tpu.memory_space<vmem>>, vector<4x1xf32>
    %c0_3 = arith.constant 0 : index
    %c0_4 = arith.constant 0 : index
    %2 = vector.load %arg5[%c0_3, %c0_4] : memref<6x6xf32, #tpu.memory_space<vmem>>, vector<6x6xf32>
    %c0_5 = arith.constant 0 : index
    %c0_6 = arith.constant 0 : index
    %3 = vector.load %arg6[%c0_5, %c0_6] : memref<6x1xf32, #tpu.memory_space<vmem>>, vector<6x1xf32>
    %c0_7 = arith.constant 0 : index
    %c0_8 = arith.constant 0 : index
    %4 = vector.load %arg7[%c0_7, %c0_8] : memref<1x6xf32, #tpu.memory_space<vmem>>, vector<1x6xf32>
    %c0_9 = arith.constant 0 : index
    %c0_10 = arith.constant 0 : index
    %c0_11 = arith.constant 0 : index
    %5 = vector.load %arg1[%c0_9, %c0_10, %c0_11] : memref<2x4x256xf32, #tpu.memory_space<vmem>>, vector<1x4x256xf32>
    %6 = vector.shape_cast %5 : vector<1x4x256xf32> to vector<4x256xf32>
    %c0_12 = arith.constant 0 : index
    %c0_13 = arith.constant 0 : index
    %c0_14 = arith.constant 0 : index
    %7 = vector.load %arg2[%c0_12, %c0_13, %c0_14] : memref<2x6x256xf32, #tpu.memory_space<vmem>>, vector<1x6x256xf32>
    %8 = vector.shape_cast %7 : vector<1x6x256xf32> to vector<6x256xf32>
    %cst = arith.constant dense<0.000000e+00> : vector<4x256xf32>
    %9 = tpu.matmul %0, %6, %cst {dimension_numbers = #tpu.dot_dimension_numbers<[1], [0], [0], [1], [0, 0, 1, 1], [], []>} : vector<4x4xf32>, vector<4x256xf32>, vector<4x256xf32> -> vector<4x256xf32>
    %10 = vector.broadcast %1 : vector<4x1xf32> to vector<4x256xf32>
    %11 = arith.addf %9, %10 : vector<4x256xf32>
    %12 = arith.negf %11 : vector<4x256xf32>
    %13 = math.exp %12 : vector<4x256xf32>
    %cst_15 = arith.constant 1.000000e+00 : f32
    %14 = vector.broadcast %cst_15 : f32 to vector<4x256xf32>
    %15 = arith.addf %14, %13 : vector<4x256xf32>
    %16 = arith.divf %14, %15 : vector<4x256xf32>
    %cst_16 = arith.constant dense<0.000000e+00> : vector<6x256xf32>
    %17 = tpu.matmul %2, %8, %cst_16 {dimension_numbers = #tpu.dot_dimension_numbers<[1], [0], [0], [1], [0, 0, 1, 1], [], []>} : vector<6x6xf32>, vector<6x256xf32>, vector<6x256xf32> -> vector<6x256xf32>
    %18 = vector.broadcast %3 : vector<6x1xf32> to vector<6x256xf32>
    %19 = arith.addf %17, %18 : vector<6x256xf32>
    %20 = arith.negf %19 : vector<6x256xf32>
    %21 = math.exp %20 : vector<6x256xf32>
    %cst_17 = arith.constant 1.000000e+00 : f32
    %22 = vector.broadcast %cst_17 : f32 to vector<6x256xf32>
    %23 = arith.addf %22, %21 : vector<6x256xf32>
    %24 = arith.divf %22, %23 : vector<6x256xf32>
    %cst_18 = arith.constant dense<0.000000e+00> : vector<1x256xf32>
    %25 = tpu.matmul %4, %24, %cst_18 {dimension_numbers = #tpu.dot_dimension_numbers<[1], [0], [0], [1], [0, 0, 1, 1], [], []>} : vector<1x6xf32>, vector<6x256xf32>, vector<1x256xf32> -> vector<1x256xf32>
    %26 = vector.broadcast %25 : vector<1x256xf32> to vector<4x256xf32>
    %27 = arith.mulf %16, %26 : vector<4x256xf32>
    %cst_19 = arith.constant dense<0.000000e+00> : vector<4xf32>
    %28 = vector.multi_reduction <add>, %27, %cst_19 [1] : vector<4x256xf32> to vector<4xf32>
    %29 = vector.shape_cast %28 : vector<4xf32> to vector<4x1xf32>
    %30 = vector.broadcast %29 : vector<4x1xf32> to vector<4x256xf32>
    %31 = arith.mulf %6, %30 : vector<4x256xf32>
    %c0_20 = arith.constant 0 : index
    %c0_21 = arith.constant 0 : index
    %c0_22 = arith.constant 0 : index
    %32 = vector.load %arg8[%c0_20, %c0_21, %c0_22] : memref<2x4x256xf32, #tpu.memory_space<vmem>>, vector<1x4x256xf32>
    %33 = vector.shape_cast %32 : vector<1x4x256xf32> to vector<4x256xf32>
    %34 = vector.shape_cast %31 : vector<4x256xf32> to vector<1x4x256xf32>
    tpu.vector_store %arg8[%c0_20, %c0_21, %c0_22], %34 {strides = array<i32>} : memref<2x4x256xf32, #tpu.memory_space<vmem>>, vector<1x4x256xf32>,
    %c1 = arith.constant 1 : index
    %c0_23 = arith.constant 0 : index
    %c0_24 = arith.constant 0 : index
    %35 = vector.load %arg1[%c1, %c0_23, %c0_24] : memref<2x4x256xf32, #tpu.memory_space<vmem>>, vector<1x4x256xf32>
    %36 = vector.shape_cast %35 : vector<1x4x256xf32> to vector<4x256xf32>
    %c1_25 = arith.constant 1 : index
    %c0_26 = arith.constant 0 : index
    %c0_27 = arith.constant 0 : index
    %37 = vector.load %arg2[%c1_25, %c0_26, %c0_27] : memref<2x6x256xf32, #tpu.memory_space<vmem>>, vector<1x6x256xf32>
    %38 = vector.shape_cast %37 : vector<1x6x256xf32> to vector<6x256xf32>
    %cst_28 = arith.constant dense<0.000000e+00> : vector<4x256xf32>
    %39 = tpu.matmul %0, %36, %cst_28 {dimension_numbers = #tpu.dot_dimension_numbers<[1], [0], [0], [1], [0, 0, 1, 1], [], []>} : vector<4x4xf32>, vector<4x256xf32>, vector<4x256xf32> -> vector<4x256xf32>
    %40 = vector.broadcast %1 : vector<4x1xf32> to vector<4x256xf32>
    %41 = arith.addf %39, %40 : vector<4x256xf32>
    %42 = arith.negf %41 : vector<4x256xf32>
    %43 = math.exp %42 : vector<4x256xf32>
    %cst_29 = arith.constant 1.000000e+00 : f32
    %44 = vector.broadcast %cst_29 : f32 to vector<4x256xf32>
    %45 = arith.addf %44, %43 : vector<4x256xf32>
    %46 = arith.divf %44, %45 : vector<4x256xf32>
    %cst_30 = arith.constant dense<0.000000e+00> : vector<6x256xf32>
    %47 = tpu.matmul %2, %38, %cst_30 {dimension_numbers = #tpu.dot_dimension_numbers<[1], [0], [0], [1], [0, 0, 1, 1], [], []>} : vector<6x6xf32>, vector<6x256xf32>, vector<6x256xf32> -> vector<6x256xf32>
    %48 = vector.broadcast %3 : vector<6x1xf32> to vector<6x256xf32>
    %49 = arith.addf %47, %48 : vector<6x256xf32>
    %50 = arith.negf %49 : vector<6x256xf32>
    %51 = math.exp %50 : vector<6x256xf32>
    %cst_31 = arith.constant 1.000000e+00 : f32
    %52 = vector.broadcast %cst_31 : f32 to vector<6x256xf32>
    %53 = arith.addf %52, %51 : vector<6x256xf32>
    %54 = arith.divf %52, %53 : vector<6x256xf32>
    %cst_32 = arith.constant dense<0.000000e+00> : vector<1x256xf32>
    %55 = tpu.matmul %4, %54, %cst_32 {dimension_numbers = #tpu.dot_dimension_numbers<[1], [0], [0], [1], [0, 0, 1, 1], [], []>} : vector<1x6xf32>, vector<6x256xf32>, vector<1x256xf32> -> vector<1x256xf32>
    %56 = vector.broadcast %55 : vector<1x256xf32> to vector<4x256xf32>
    %57 = arith.mulf %46, %56 : vector<4x256xf32>
    %cst_33 = arith.constant dense<0.000000e+00> : vector<4xf32>
    %58 = vector.multi_reduction <add>, %57, %cst_33 [1] : vector<4x256xf32> to vector<4xf32>
    %59 = vector.shape_cast %58 : vector<4xf32> to vector<4x1xf32>
    %60 = vector.broadcast %59 : vector<4x1xf32> to vector<4x256xf32>
    %61 = arith.mulf %36, %60 : vector<4x256xf32>
    %c1_34 = arith.constant 1 : index
    %c0_35 = arith.constant 0 : index
    %c0_36 = arith.constant 0 : index
    %62 = vector.load %arg8[%c1_34, %c0_35, %c0_36] : memref<2x4x256xf32, #tpu.memory_space<vmem>>, vector<1x4x256xf32>
    %63 = vector.shape_cast %62 : vector<1x4x256xf32> to vector<4x256xf32>
    %64 = vector.shape_cast %61 : vector<4x256xf32> to vector<1x4x256xf32>
    tpu.vector_store %arg8[%c1_34, %c0_35, %c0_36], %64 {strides = array<i32>} : memref<2x4x256xf32, #tpu.memory_space<vmem>>, vector<1x4x256xf32>,
    return
  }
  func.func @transform_0(%arg0: i32) -> (i32, i32, i32) {
    %c0_i32 = arith.constant 0 : i32
    %c0_i32_0 = arith.constant 0 : i32
    %c0_i32_1 = arith.constant 0 : i32
    return %arg0, %c0_i32, %c0_i32_0 : i32, i32, i32
  }
  func.func @transform_1(%arg0: i32) -> (i32, i32, i32) {
    %c0_i32 = arith.constant 0 : i32
    %c0_i32_0 = arith.constant 0 : i32
    %c0_i32_1 = arith.constant 0 : i32
    return %arg0, %c0_i32, %c0_i32_0 : i32, i32, i32
  }
  func.func @transform_2(%arg0: i32) -> (i32, i32) {
    %c0_i32 = arith.constant 0 : i32
    %c0_i32_0 = arith.constant 0 : i32
    %c0_i32_1 = arith.constant 0 : i32
    return %c0_i32, %c0_i32_0 : i32, i32
  }
  func.func @transform_3(%arg0: i32) -> (i32, i32) {
    %c0_i32 = arith.constant 0 : i32
    %c0_i32_0 = arith.constant 0 : i32
    %c0_i32_1 = arith.constant 0 : i32
    return %c0_i32, %c0_i32_0 : i32, i32
  }
  func.func @transform_4(%arg0: i32) -> (i32, i32) {
    %c0_i32 = arith.constant 0 : i32
    %c0_i32_0 = arith.constant 0 : i32
    %c0_i32_1 = arith.constant 0 : i32
    return %c0_i32, %c0_i32_0 : i32, i32
  }
  func.func @transform_5(%arg0: i32) -> (i32, i32) {
    %c0_i32 = arith.constant 0 : i32
    %c0_i32_0 = arith.constant 0 : i32
    %c0_i32_1 = arith.constant 0 : i32
    return %c0_i32, %c0_i32_0 : i32, i32
  }
  func.func @transform_6(%arg0: i32) -> (i32, i32) {
    %c0_i32 = arith.constant 0 : i32
    %c0_i32_0 = arith.constant 0 : i32
    %c0_i32_1 = arith.constant 0 : i32
    return %c0_i32, %c0_i32_0 : i32, i32
  }
  func.func @transform_7(%arg0: i32) -> (i32, i32, i32) {
    %c0_i32 = arith.constant 0 : i32
    %c0_i32_0 = arith.constant 0 : i32
    %c0_i32_1 = arith.constant 0 : i32
    return %arg0, %c0_i32, %c0_i32_0 : i32, i32, i32
  }
}

</mosaic_0001>

<llo_original>
// kernel: tpu_custom_call.1
$region0: #{tpu_custom_call.1}
  #allocation0 [shape = 'u32[]', space=smem, size = 0x4, offset = 0x4, fixed_abs, tag = 'smem constant byte address 0x4 - core index']
  #allocation1 [shape = 'u32[144,128]{1,0:T(1,128)}', space=vmem, size = 0x12000, scoped, tag = 'internal scratch']
  %s0 = inlined_call_operand.vmem [shape: f32[2,4,256], index: 0, kind: input, shape index: {}]
  %s1 = inlined_call_operand.vmem [shape: f32[2,6,256], index: 1, kind: input, shape index: {}]
  %s2 = inlined_call_operand.vmem [shape: f32[4,4], index: 2, kind: input, shape index: {}]
  %s3 = inlined_call_operand.vmem [shape: f32[4,1], index: 3, kind: input, shape index: {}]
  %s4 = inlined_call_operand.vmem [shape: f32[6,6], index: 4, kind: input, shape index: {}]
  %s5 = inlined_call_operand.vmem [shape: f32[6,1], index: 5, kind: input, shape index: {}]
  %s6 = inlined_call_operand.vmem [shape: f32[1,6], index: 6, kind: input, shape index: {}]
  %s7 = inlined_call_operand.hbm [shape: f32[2,4,256], index: 7, kind: output, shape index: {}]
  %s8 = sld [smem:[#allocation0]]
  $region38: #{tpu_custom_call.1} parent=0
    _
  %s10 = ssub.s32 1, %s8
  %s11 = scalar_select 0, %s10, %s8
  $region1: #{tpu_custom_call.1} parent=0
    #allocation2 [shape = 'u8[8192]{0}', space=vmem, size = 0x2000, scoped, tag = 'output window, operand 0, single buffered']
    #allocation3 [shape = 's32[1]{0}', space=sflag, size = 0x4, scoped, tag = 'scoped memory for tpu_custom_call.1']
    %12 = vsyncpa [#allocation3], 0
    // Predicated region
    $region2: #{tpu_custom_call.1} parent=1 // pred_check
      _
    $region3: #{tpu_custom_call.1} parent=1 // pred_check_branch
      %14 = sbr.rel (0) target = $region5
    $region4: #{tpu_custom_call.1} parent=1 // pred_region
      _
    $region5: #{tpu_custom_call.1} parent=1 // pred_fallthru
      _
    // Predicated region
    $region6: #{tpu_custom_call.1} parent=1 // pred_check
      _
    $region7: #{tpu_custom_call.1} parent=1 // pred_check_branch
      %16 = sbr.rel (0) target = $region9
    $region8: #{tpu_custom_call.1} parent=1 // pred_region
      _
    $region9: #{tpu_custom_call.1} parent=1 // pred_fallthru
      _
    // Predicated region
    $region10: #{tpu_custom_call.1} parent=1 // pred_check
      _
    $region11: #{tpu_custom_call.1} parent=1 // pred_check_branch
      %18 = sbr.rel (0) target = $region13
    $region12: #{tpu_custom_call.1} parent=1 // pred_region
      _
    $region13: #{tpu_custom_call.1} parent=1 // pred_fallthru
      _
    // Predicated region
    $region14: #{tpu_custom_call.1} parent=1 // pred_check
      _
    $region15: #{tpu_custom_call.1} parent=1 // pred_check_branch
      %20 = sbr.rel (0) target = $region17
    $region16: #{tpu_custom_call.1} parent=1 // pred_region
      _
    $region17: #{tpu_custom_call.1} parent=1 // pred_fallthru
      _
    // Predicated region
    $region18: #{tpu_custom_call.1} parent=1 // pred_check
      _
    $region19: #{tpu_custom_call.1} parent=1 // pred_check_branch
      %22 = sbr.rel (0) target = $region21
    $region20: #{tpu_custom_call.1} parent=1 // pred_region
      _
    $region21: #{tpu_custom_call.1} parent=1 // pred_fallthru
      _
    // Predicated region
    $region22: #{tpu_custom_call.1} parent=1 // pred_check
      _
    $region23: #{tpu_custom_call.1} parent=1 // pred_check_branch
      %24 = sbr.rel (0) target = $region25
    $region24: #{tpu_custom_call.1} parent=1 // pred_region
      _
    $region25: #{tpu_custom_call.1} parent=1 // pred_fallthru
      _
    // Predicated region
    $region26: #{tpu_custom_call.1} parent=1 // pred_check
      _
    $region27: #{tpu_custom_call.1} parent=1 // pred_check_branch
      %26 = sbr.rel (0) target = $region29
    $region28: #{tpu_custom_call.1} parent=1 // pred_region
      _
    $region29: #{tpu_custom_call.1} parent=1 // pred_fallthru
      _
    %v27 = vld [vmem:[%s2] sm:$0xf]
    %v28 = vld [vmem:[%s3] sm:$0xf]
    %v29 = vld [vmem:[%s4] sm:$0x3f]
    %v30 = vld [vmem:[%s5] sm:$0x3f]
    %v31 = vld [vmem:[%s6] sm:$0x1]
    %v32 = vld [vmem:[%s0] sm:$0xff]
    %v33 = vld [vmem:[%s1] sm:$0x3f]
    %v34 = vld [vmem:[%s1 + $0x8] sm:$0x3f]
    %36 = vset.pattern.permute.xlu0 0
    %37 = vperm.xlu0 %36, %v28
    %v38 = vpop.permute.xlu0 %37
    %v41 = vcombine.high %v32, %v32
    %vm42 = vcmask 31744
    %v44 = vsel %vm42, %v27, 0
    %vm46 = vcmask 1043456
    %v47 = vsel %vm46, %v32, 0
    %v49 = vsel %vm46, %v41, 0
    %51 = vmatprep.subr.mxu0 %v49
    %52 = vmatpush1.msra.mxu0 %v47
    %53 = vmatprep.subr.mxu0 0.0
    %54 = vmatpush1.msra.mxu0 0.0
    %55 = vmatprep.subr.mxu0 0.0
    %56 = vmatpush1.msra.mxu0 0.0
    %57 = vmatprep.subr.mxu0 0.0
    %58 = vmatpush1.msra.mxu0 0.0
    %59 = vmatprep.subr.mxu0 0.0
    %60 = vmatpush1.msra.mxu0 0.0
    %61 = vmatprep.subr.mxu0 0.0
    %62 = vmatpush1.msra.mxu0 0.0
    %63 = vmatprep.subr.mxu0 0.0
    %64 = vmatpush1.msra.mxu0 0.0
    %65 = vmatprep.subr.mxu0 0.0
    %66 = vmatpush1.msra.mxu0 0.0
    %67 = vmatprep.subr.mxu0 0.0
    %68 = vmatpush1.msra.mxu0 0.0
    %69 = vmatprep.subr.mxu0 0.0
    %70 = vmatpush1.msra.mxu0 0.0
    %71 = vmatprep.subr.mxu0 0.0
    %72 = vmatpush1.msra.mxu0 0.0
    %73 = vmatprep.subr.mxu0 0.0
    %74 = vmatpush1.msra.mxu0 0.0
    %75 = vmatprep.subr.mxu0 0.0
    %76 = vmatpush1.msra.mxu0 0.0
    %77 = vmatprep.subr.mxu0 0.0
    %78 = vmatpush1.msra.mxu0 0.0
    %79 = vmatprep.subr.mxu0 0.0
    %80 = vmatpush1.msra.mxu0 0.0
    %81 = vmatprep.subr.mxu0 0.0
    %82 = vmatpush1.msra.mxu0 0.0
    %83 = vmatprep.subr.mxu0 0.0
    %84 = vmatpush1.msra.mxu0 0.0
    %85 = vmatprep.subr.mxu0 0.0
    %86 = vmatpush1.msra.mxu0 0.0
    %87 = vmatprep.subr.mxu0 0.0
    %88 = vmatpush1.msra.mxu0 0.0
    %89 = vmatprep.subr.mxu0 0.0
    %90 = vmatpush1.msra.mxu0 0.0
    %91 = vmatprep.subr.mxu0 0.0
    %92 = vmatpush1.msra.mxu0 0.0
    %93 = vmatprep.subr.mxu0 0.0
    %94 = vmatpush1.msra.mxu0 0.0
    %95 = vmatprep.subr.mxu0 0.0
    %96 = vmatpush1.msra.mxu0 0.0
    %97 = vmatprep.subr.mxu0 0.0
    %98 = vmatpush1.msra.mxu0 0.0
    %99 = vmatprep.subr.mxu0 0.0
    %100 = vmatpush1.msra.mxu0 0.0
    %101 = vmatprep.subr.mxu0 0.0
    %102 = vmatpush1.msra.mxu0 0.0
    %103 = vmatprep.subr.mxu0 0.0
    %104 = vmatpush1.msra.mxu0 0.0
    %105 = vmatprep.subr.mxu0 0.0
    %106 = vmatpush1.msra.mxu0 0.0
    %107 = vmatprep.subr.mxu0 0.0
    %108 = vmatpush1.msra.mxu0 0.0
    %109 = vmatprep.subr.mxu0 0.0
    %110 = vmatpush1.msra.mxu0 0.0
    %111 = vmatprep.subr.mxu0 0.0
    %112 = vmatpush1.msra.mxu0 0.0
    %113 = vmatprep.subr.mxu0 0.0
    %114 = vmatpush1.msra.mxu0 0.0
    %115 = vmatprep.mubr.f32.mxu0 0.0
    %116 = vmatmul.mubr.f32.gmra.mrb[0].mxu0 %v44
    %v117 = vpop.f32.mrb[0].mxu0
    %v118 = vadd.f32 %v38, %v117
    %v119 = vpop.f32.mrb[0].mxu0
    %v120 = vadd.f32 %v38, %v119
    %121 = vdwg.mxu0
    %v122 = vxor.u32 %v118, 2147483648
    %v123 = vxor.u32 %v120, 2147483648
    %v124 = vmul.f32 %v122, 1.442695
    %v125 = vpow.pop %v124
    %v126 = vmul.f32 %v123, 1.442695
    %v127 = vpow.pop %v126
    %v128 = vadd.f32 %v125, 1.0
    %v129 = vadd.f32 %v127, 1.0
    %v130 = vrcp.pop %v128
    %v131 = vmul.f32 1.0, %v130
    %v132 = vrcp.pop %v129
    %v133 = vmul.f32 1.0, %v132
    %135 = vset.pattern.permute.xlu0 0
    %136 = vperm.xlu0 %135, %v30
    %v137 = vpop.permute.xlu0 %136
    %vm139 = vcmask 48128
    %v141 = vsel %vm139, %v29, 0
    %vm143 = vcmask 1045504
    %v145 = vsel %vm143, %v33, 0
    %v148 = vsel %vm143, %v34, 0
    %150 = vmatprep.subr.mxu0 %v148
    %151 = vmatpush1.msra.mxu0 %v145
    %152 = vmatprep.subr.mxu0 0.0
    %153 = vmatpush1.msra.mxu0 0.0
    %154 = vmatprep.subr.mxu0 0.0
    %155 = vmatpush1.msra.mxu0 0.0
    %156 = vmatprep.subr.mxu0 0.0
    %157 = vmatpush1.msra.mxu0 0.0
    %158 = vmatprep.subr.mxu0 0.0
    %159 = vmatpush1.msra.mxu0 0.0
    %160 = vmatprep.subr.mxu0 0.0
    %161 = vmatpush1.msra.mxu0 0.0
    %162 = vmatprep.subr.mxu0 0.0
    %163 = vmatpush1.msra.mxu0 0.0
    %164 = vmatprep.subr.mxu0 0.0
    %165 = vmatpush1.msra.mxu0 0.0
    %166 = vmatprep.subr.mxu0 0.0
    %167 = vmatpush1.msra.mxu0 0.0
    %168 = vmatprep.subr.mxu0 0.0
    %169 = vmatpush1.msra.mxu0 0.0
    %170 = vmatprep.subr.mxu0 0.0
    %171 = vmatpush1.msra.mxu0 0.0
    %172 = vmatprep.subr.mxu0 0.0
    %173 = vmatpush1.msra.mxu0 0.0
    %174 = vmatprep.subr.mxu0 0.0
    %175 = vmatpush1.msra.mxu0 0.0
    %176 = vmatprep.subr.mxu0 0.0
    %177 = vmatpush1.msra.mxu0 0.0
    %178 = vmatprep.subr.mxu0 0.0
    %179 = vmatpush1.msra.mxu0 0.0
    %180 = vmatprep.subr.mxu0 0.0
    %181 = vmatpush1.msra.mxu0 0.0
    %182 = vmatprep.subr.mxu0 0.0
    %183 = vmatpush1.msra.mxu0 0.0
    %184 = vmatprep.subr.mxu0 0.0
    %185 = vmatpush1.msra.mxu0 0.0
    %186 = vmatprep.subr.mxu0 0.0
    %187 = vmatpush1.msra.mxu0 0.0
    %188 = vmatprep.subr.mxu0 0.0
    %189 = vmatpush1.msra.mxu0 0.0
    %190 = vmatprep.subr.mxu0 0.0
    %191 = vmatpush1.msra.mxu0 0.0
    %192 = vmatprep.subr.mxu0 0.0
    %193 = vmatpush1.msra.mxu0 0.0
    %194 = vmatprep.subr.mxu0 0.0
    %195 = vmatpush1.msra.mxu0 0.0
    %196 = vmatprep.subr.mxu0 0.0
    %197 = vmatpush1.msra.mxu0 0.0
    %198 = vmatprep.subr.mxu0 0.0
    %199 = vmatpush1.msra.mxu0 0.0
    %200 = vmatprep.subr.mxu0 0.0
    %201 = vmatpush1.msra.mxu0 0.0
    %202 = vmatprep.subr.mxu0 0.0
    %203 = vmatpush1.msra.mxu0 0.0
    %204 = vmatprep.subr.mxu0 0.0
    %205 = vmatpush1.msra.mxu0 0.0
    %206 = vmatprep.subr.mxu0 0.0
    %207 = vmatpush1.msra.mxu0 0.0
    %208 = vmatprep.subr.mxu0 0.0
    %209 = vmatpush1.msra.mxu0 0.0
    %210 = vmatprep.subr.mxu0 0.0
    %211 = vmatpush1.msra.mxu0 0.0
    %212 = vmatprep.subr.mxu0 0.0
    %213 = vmatpush1.msra.mxu0 0.0
    %214 = vmatprep.mubr.f32.mxu0 0.0
    %215 = vmatmul.mubr.f32.gmra.mrb[0].mxu0 %v141
    %v216 = vpop.f32.mrb[0].mxu0
    %v217 = vadd.f32 %v137, %v216
    %v218 = vpop.f32.mrb[0].mxu0
    %v219 = vadd.f32 %v137, %v218
    %220 = vdwg.mxu0
    %v221 = vxor.u32 %v217, 2147483648
    %v222 = vxor.u32 %v219, 2147483648
    %v223 = vmul.f32 %v221, 1.442695
    %v224 = vpow.pop %v223
    %v225 = vmul.f32 %v222, 1.442695
    %v226 = vpow.pop %v225
    %v227 = vadd.f32 %v224, 1.0
    %v228 = vadd.f32 %v226, 1.0
    %v229 = vrcp.pop %v227
    %v230 = vmul.f32 1.0, %v229
    %v231 = vrcp.pop %v228
    %v232 = vmul.f32 1.0, %v231
    %v234 = vsel %vm139, %v31, 0
    %v237 = vsel %vm143, %v230, 0
    %v240 = vsel %vm143, %v232, 0
    %242 = vmatprep.subr.mxu0 %v240
    %243 = vmatpush1.msra.mxu0 %v237
    %244 = vmatprep.subr.mxu0 0.0
    %245 = vmatpush1.msra.mxu0 0.0
    %246 = vmatprep.subr.mxu0 0.0
    %247 = vmatpush1.msra.mxu0 0.0
    %248 = vmatprep.subr.mxu0 0.0
    %249 = vmatpush1.msra.mxu0 0.0
    %250 = vmatprep.subr.mxu0 0.0
    %251 = vmatpush1.msra.mxu0 0.0
    %252 = vmatprep.subr.mxu0 0.0
    %253 = vmatpush1.msra.mxu0 0.0
    %254 = vmatprep.subr.mxu0 0.0
    %255 = vmatpush1.msra.mxu0 0.0
    %256 = vmatprep.subr.mxu0 0.0
    %257 = vmatpush1.msra.mxu0 0.0
    %258 = vmatprep.subr.mxu0 0.0
    %259 = vmatpush1.msra.mxu0 0.0
    %260 = vmatprep.subr.mxu0 0.0
    %261 = vmatpush1.msra.mxu0 0.0
    %262 = vmatprep.subr.mxu0 0.0
    %263 = vmatpush1.msra.mxu0 0.0
    %264 = vmatprep.subr.mxu0 0.0
    %265 = vmatpush1.msra.mxu0 0.0
    %266 = vmatprep.subr.mxu0 0.0
    %267 = vmatpush1.msra.mxu0 0.0
    %268 = vmatprep.subr.mxu0 0.0
    %269 = vmatpush1.msra.mxu0 0.0
    %270 = vmatprep.subr.mxu0 0.0
    %271 = vmatpush1.msra.mxu0 0.0
    %272 = vmatprep.subr.mxu0 0.0
    %273 = vmatpush1.msra.mxu0 0.0
    %274 = vmatprep.subr.mxu0 0.0
    %275 = vmatpush1.msra.mxu0 0.0
    %276 = vmatprep.subr.mxu0 0.0
    %277 = vmatpush1.msra.mxu0 0.0
    %278 = vmatprep.subr.mxu0 0.0
    %279 = vmatpush1.msra.mxu0 0.0
    %280 = vmatprep.subr.mxu0 0.0
    %281 = vmatpush1.msra.mxu0 0.0
    %282 = vmatprep.subr.mxu0 0.0
    %283 = vmatpush1.msra.mxu0 0.0
    %284 = vmatprep.subr.mxu0 0.0
    %285 = vmatpush1.msra.mxu0 0.0
    %286 = vmatprep.subr.mxu0 0.0
    %287 = vmatpush1.msra.mxu0 0.0
    %288 = vmatprep.subr.mxu0 0.0
    %289 = vmatpush1.msra.mxu0 0.0
    %290 = vmatprep.subr.mxu0 0.0
    %291 = vmatpush1.msra.mxu0 0.0
    %292 = vmatprep.subr.mxu0 0.0
    %293 = vmatpush1.msra.mxu0 0.0
    %294 = vmatprep.subr.mxu0 0.0
    %295 = vmatpush1.msra.mxu0 0.0
    %296 = vmatprep.subr.mxu0 0.0
    %297 = vmatpush1.msra.mxu0 0.0
    %298 = vmatprep.subr.mxu0 0.0
    %299 = vmatpush1.msra.mxu0 0.0
    %300 = vmatprep.subr.mxu0 0.0
    %301 = vmatpush1.msra.mxu0 0.0
    %302 = vmatprep.subr.mxu0 0.0
    %303 = vmatpush1.msra.mxu0 0.0
    %304 = vmatprep.subr.mxu0 0.0
    %305 = vmatpush1.msra.mxu0 0.0
    %306 = vmatprep.mubr.f32.mxu0 0.0
    %307 = vmatmul.mubr.f32.gmra.mrb[0].mxu0 %v234
    %v308 = vpop.f32.mrb[0].mxu0
    %v309 = vadd.f32 0.0, %v308
    %v310 = vpop.f32.mrb[0].mxu0
    %v311 = vadd.f32 0.0, %v310
    %312 = vdwg.mxu0
    %v313 = vlaneseq
    %v314 = vshrl.u32 %v313, 7
    %v315 = vsub.s32 0, %v314
    %v316 = vrot.slane %v309, %v315
    %v317 = vlaneseq
    %v318 = vshrl.u32 %v317, 7
    %v319 = vsub.s32 0, %v318
    %v320 = vrot.slane %v311, %v319
    %v321 = vmul.f32 %v131, %v316
    %v322 = vmul.f32 %v133, %v320
    %v323 = vsel %vm46, %v321, 0.0
    %v324 = vsel %vm46, %v322, 0.0
    %v325 = vadd.f32 %v323, %v324
    %326 = vadd.xlane.f32.xlu0 %v325
    %v327 = vpop.xlane.xlu0 %326
    %v330 = vunpack.c.l.s4 839922192
    %v331 = vunpack.c.0.s8 %v330
    %v332 = vlaneseq
    %v333 = vshrl.u32 %v332, 7
    %v334 = vsub.s32 %v331, %v333
    %v335 = vrot.slane %v327, %v334
    %v337 = vmul.f32 %v32, %v335
    %338 = vst [vmem:[#allocation2] sm:$0xff] %v337
    %s339 = scalar_lea.vmem %s0, 8
    %v340 = vld [vmem:[%s339] sm:$0xff]
    %s341 = scalar_lea.vmem %s1, 16
    %v342 = vld [vmem:[%s341] sm:$0x3f]
    %v343 = vld [vmem:[%s341 + $0x8] sm:$0x3f]
    %v345 = vcombine.high %v340, %v340
    %v346 = vsel %vm46, %v340, 0
    %v348 = vsel %vm46, %v345, 0
    %350 = vmatprep.subr.mxu0 %v348
    %351 = vmatpush1.msra.mxu0 %v346
    %352 = vmatprep.subr.mxu0 0.0
    %353 = vmatpush1.msra.mxu0 0.0
    %354 = vmatprep.subr.mxu0 0.0
    %355 = vmatpush1.msra.mxu0 0.0
    %356 = vmatprep.subr.mxu0 0.0
    %357 = vmatpush1.msra.mxu0 0.0
    %358 = vmatprep.subr.mxu0 0.0
    %359 = vmatpush1.msra.mxu0 0.0
    %360 = vmatprep.subr.mxu0 0.0
    %361 = vmatpush1.msra.mxu0 0.0
    %362 = vmatprep.subr.mxu0 0.0
    %363 = vmatpush1.msra.mxu0 0.0
    %364 = vmatprep.subr.mxu0 0.0
    %365 = vmatpush1.msra.mxu0 0.0
    %366 = vmatprep.subr.mxu0 0.0
    %367 = vmatpush1.msra.mxu0 0.0
    %368 = vmatprep.subr.mxu0 0.0
    %369 = vmatpush1.msra.mxu0 0.0
    %370 = vmatprep.subr.mxu0 0.0
    %371 = vmatpush1.msra.mxu0 0.0
    %372 = vmatprep.subr.mxu0 0.0
    %373 = vmatpush1.msra.mxu0 0.0
    %374 = vmatprep.subr.mxu0 0.0
    %375 = vmatpush1.msra.mxu0 0.0
    %376 = vmatprep.subr.mxu0 0.0
    %377 = vmatpush1.msra.mxu0 0.0
    %378 = vmatprep.subr.mxu0 0.0
    %379 = vmatpush1.msra.mxu0 0.0
    %380 = vmatprep.subr.mxu0 0.0
    %381 = vmatpush1.msra.mxu0 0.0
    %382 = vmatprep.subr.mxu0 0.0
    %383 = vmatpush1.msra.mxu0 0.0
    %384 = vmatprep.subr.mxu0 0.0
    %385 = vmatpush1.msra.mxu0 0.0
    %386 = vmatprep.subr.mxu0 0.0
    %387 = vmatpush1.msra.mxu0 0.0
    %388 = vmatprep.subr.mxu0 0.0
    %389 = vmatpush1.msra.mxu0 0.0
    %390 = vmatprep.subr.mxu0 0.0
    %391 = vmatpush1.msra.mxu0 0.0
    %392 = vmatprep.subr.mxu0 0.0
    %393 = vmatpush1.msra.mxu0 0.0
    %394 = vmatprep.subr.mxu0 0.0
    %395 = vmatpush1.msra.mxu0 0.0
    %396 = vmatprep.subr.mxu0 0.0
    %397 = vmatpush1.msra.mxu0 0.0
    %398 = vmatprep.subr.mxu0 0.0
    %399 = vmatpush1.msra.mxu0 0.0
    %400 = vmatprep.subr.mxu0 0.0
    %401 = vmatpush1.msra.mxu0 0.0
    %402 = vmatprep.subr.mxu0 0.0
    %403 = vmatpush1.msra.mxu0 0.0
    %404 = vmatprep.subr.mxu0 0.0
    %405 = vmatpush1.msra.mxu0 0.0
    %406 = vmatprep.subr.mxu0 0.0
    %407 = vmatpush1.msra.mxu0 0.0
    %408 = vmatprep.subr.mxu0 0.0
    %409 = vmatpush1.msra.mxu0 0.0
    %410 = vmatprep.subr.mxu0 0.0
    %411 = vmatpush1.msra.mxu0 0.0
    %412 = vmatprep.subr.mxu0 0.0
    %413 = vmatpush1.msra.mxu0 0.0
    %414 = vmatprep.mubr.f32.mxu0 0.0
    %415 = vmatmul.mubr.f32.gmra.mrb[0].mxu0 %v44
    %v416 = vpop.f32.mrb[0].mxu0
    %v417 = vadd.f32 %v38, %v416
    %v418 = vpop.f32.mrb[0].mxu0
    %v419 = vadd.f32 %v38, %v418
    %420 = vdwg.mxu0
    %v421 = vxor.u32 %v417, 2147483648
    %v422 = vxor.u32 %v419, 2147483648
    %v423 = vmul.f32 %v421, 1.442695
    %v424 = vpow.pop %v423
    %v425 = vmul.f32 %v422, 1.442695
    %v426 = vpow.pop %v425
    %v427 = vadd.f32 %v424, 1.0
    %v428 = vadd.f32 %v426, 1.0
    %v429 = vrcp.pop %v427
    %v430 = vmul.f32 1.0, %v429
    %v431 = vrcp.pop %v428
    %v432 = vmul.f32 1.0, %v431
    %v434 = vsel %vm143, %v342, 0
    %v437 = vsel %vm143, %v343, 0
    %439 = vmatprep.subr.mxu0 %v437
    %440 = vmatpush1.msra.mxu0 %v434
    %441 = vmatprep.subr.mxu0 0.0
    %442 = vmatpush1.msra.mxu0 0.0
    %443 = vmatprep.subr.mxu0 0.0
    %444 = vmatpush1.msra.mxu0 0.0
    %445 = vmatprep.subr.mxu0 0.0
    %446 = vmatpush1.msra.mxu0 0.0
    %447 = vmatprep.subr.mxu0 0.0
    %448 = vmatpush1.msra.mxu0 0.0
    %449 = vmatprep.subr.mxu0 0.0
    %450 = vmatpush1.msra.mxu0 0.0
    %451 = vmatprep.subr.mxu0 0.0
    %452 = vmatpush1.msra.mxu0 0.0
    %453 = vmatprep.subr.mxu0 0.0
    %454 = vmatpush1.msra.mxu0 0.0
    %455 = vmatprep.subr.mxu0 0.0
    %456 = vmatpush1.msra.mxu0 0.0
    %457 = vmatprep.subr.mxu0 0.0
    %458 = vmatpush1.msra.mxu0 0.0
    %459 = vmatprep.subr.mxu0 0.0
    %460 = vmatpush1.msra.mxu0 0.0
    %461 = vmatprep.subr.mxu0 0.0
    %462 = vmatpush1.msra.mxu0 0.0
    %463 = vmatprep.subr.mxu0 0.0
    %464 = vmatpush1.msra.mxu0 0.0
    %465 = vmatprep.subr.mxu0 0.0
    %466 = vmatpush1.msra.mxu0 0.0
    %467 = vmatprep.subr.mxu0 0.0
    %468 = vmatpush1.msra.mxu0 0.0
    %469 = vmatprep.subr.mxu0 0.0
    %470 = vmatpush1.msra.mxu0 0.0
    %471 = vmatprep.subr.mxu0 0.0
    %472 = vmatpush1.msra.mxu0 0.0
    %473 = vmatprep.subr.mxu0 0.0
    %474 = vmatpush1.msra.mxu0 0.0
    %475 = vmatprep.subr.mxu0 0.0
    %476 = vmatpush1.msra.mxu0 0.0
    %477 = vmatprep.subr.mxu0 0.0
    %478 = vmatpush1.msra.mxu0 0.0
    %479 = vmatprep.subr.mxu0 0.0
    %480 = vmatpush1.msra.mxu0 0.0
    %481 = vmatprep.subr.mxu0 0.0
    %482 = vmatpush1.msra.mxu0 0.0
    %483 = vmatprep.subr.mxu0 0.0
    %484 = vmatpush1.msra.mxu0 0.0
    %485 = vmatprep.subr.mxu0 0.0
    %486 = vmatpush1.msra.mxu0 0.0
    %487 = vmatprep.subr.mxu0 0.0
    %488 = vmatpush1.msra.mxu0 0.0
    %489 = vmatprep.subr.mxu0 0.0
    %490 = vmatpush1.msra.mxu0 0.0
    %491 = vmatprep.subr.mxu0 0.0
    %492 = vmatpush1.msra.mxu0 0.0
    %493 = vmatprep.subr.mxu0 0.0
    %494 = vmatpush1.msra.mxu0 0.0
    %495 = vmatprep.subr.mxu0 0.0
    %496 = vmatpush1.msra.mxu0 0.0
    %497 = vmatprep.subr.mxu0 0.0
    %498 = vmatpush1.msra.mxu0 0.0
    %499 = vmatprep.subr.mxu0 0.0
    %500 = vmatpush1.msra.mxu0 0.0
    %501 = vmatprep.subr.mxu0 0.0
    %502 = vmatpush1.msra.mxu0 0.0
    %503 = vmatprep.mubr.f32.mxu0 0.0
    %504 = vmatmul.mubr.f32.gmra.mrb[0].mxu0 %v141
    %v505 = vpop.f32.mrb[0].mxu0
    %v506 = vadd.f32 %v137, %v505
    %v507 = vpop.f32.mrb[0].mxu0
    %v508 = vadd.f32 %v137, %v507
    %509 = vdwg.mxu0
    %v510 = vxor.u32 %v506, 2147483648
    %v511 = vxor.u32 %v508, 2147483648
    %v512 = vmul.f32 %v510, 1.442695
    %v513 = vpow.pop %v512
    %v514 = vmul.f32 %v511, 1.442695
    %v515 = vpow.pop %v514
    %v516 = vadd.f32 %v513, 1.0
    %v517 = vadd.f32 %v515, 1.0
    %v518 = vrcp.pop %v516
    %v519 = vmul.f32 1.0, %v518
    %v520 = vrcp.pop %v517
    %v521 = vmul.f32 1.0, %v520
    %v523 = vsel %vm143, %v519, 0
    %v526 = vsel %vm143, %v521, 0
    %528 = vmatprep.subr.mxu0 %v526
    %529 = vmatpush1.msra.mxu0 %v523
    %530 = vmatprep.subr.mxu0 0.0
    %531 = vmatpush1.msra.mxu0 0.0
    %532 = vmatprep.subr.mxu0 0.0
    %533 = vmatpush1.msra.mxu0 0.0
    %534 = vmatprep.subr.mxu0 0.0
    %535 = vmatpush1.msra.mxu0 0.0
    %536 = vmatprep.subr.mxu0 0.0
    %537 = vmatpush1.msra.mxu0 0.0
    %538 = vmatprep.subr.mxu0 0.0
    %539 = vmatpush1.msra.mxu0 0.0
    %540 = vmatprep.subr.mxu0 0.0
    %541 = vmatpush1.msra.mxu0 0.0
    %542 = vmatprep.subr.mxu0 0.0
    %543 = vmatpush1.msra.mxu0 0.0
    %544 = vmatprep.subr.mxu0 0.0
    %545 = vmatpush1.msra.mxu0 0.0
    %546 = vmatprep.subr.mxu0 0.0
    %547 = vmatpush1.msra.mxu0 0.0
    %548 = vmatprep.subr.mxu0 0.0
    %549 = vmatpush1.msra.mxu0 0.0
    %550 = vmatprep.subr.mxu0 0.0
    %551 = vmatpush1.msra.mxu0 0.0
    %552 = vmatprep.subr.mxu0 0.0
    %553 = vmatpush1.msra.mxu0 0.0
    %554 = vmatprep.subr.mxu0 0.0
    %555 = vmatpush1.msra.mxu0 0.0
    %556 = vmatprep.subr.mxu0 0.0
    %557 = vmatpush1.msra.mxu0 0.0
    %558 = vmatprep.subr.mxu0 0.0
    %559 = vmatpush1.msra.mxu0 0.0
    %560 = vmatprep.subr.mxu0 0.0
    %561 = vmatpush1.msra.mxu0 0.0
    %562 = vmatprep.subr.mxu0 0.0
    %563 = vmatpush1.msra.mxu0 0.0
    %564 = vmatprep.subr.mxu0 0.0
    %565 = vmatpush1.msra.mxu0 0.0
    %566 = vmatprep.subr.mxu0 0.0
    %567 = vmatpush1.msra.mxu0 0.0
    %568 = vmatprep.subr.mxu0 0.0
    %569 = vmatpush1.msra.mxu0 0.0
    %570 = vmatprep.subr.mxu0 0.0
    %571 = vmatpush1.msra.mxu0 0.0
    %572 = vmatprep.subr.mxu0 0.0
    %573 = vmatpush1.msra.mxu0 0.0
    %574 = vmatprep.subr.mxu0 0.0
    %575 = vmatpush1.msra.mxu0 0.0
    %576 = vmatprep.subr.mxu0 0.0
    %577 = vmatpush1.msra.mxu0 0.0
    %578 = vmatprep.subr.mxu0 0.0
    %579 = vmatpush1.msra.mxu0 0.0
    %580 = vmatprep.subr.mxu0 0.0
    %581 = vmatpush1.msra.mxu0 0.0
    %582 = vmatprep.subr.mxu0 0.0
    %583 = vmatpush1.msra.mxu0 0.0
    %584 = vmatprep.subr.mxu0 0.0
    %585 = vmatpush1.msra.mxu0 0.0
    %586 = vmatprep.subr.mxu0 0.0
    %587 = vmatpush1.msra.mxu0 0.0
    %588 = vmatprep.subr.mxu0 0.0
    %589 = vmatpush1.msra.mxu0 0.0
    %590 = vmatprep.subr.mxu0 0.0
    %591 = vmatpush1.msra.mxu0 0.0
    %592 = vmatprep.mubr.f32.mxu0 0.0
    %593 = vmatmul.mubr.f32.gmra.mrb[0].mxu0 %v234
    %v594 = vpop.f32.mrb[0].mxu0
    %v595 = vadd.f32 0.0, %v594
    %v596 = vpop.f32.mrb[0].mxu0
    %v597 = vadd.f32 0.0, %v596
    %598 = vdwg.mxu0
    %v599 = vlaneseq
    %v600 = vshrl.u32 %v599, 7
    %v601 = vsub.s32 0, %v600
    %v602 = vrot.slane %v595, %v601
    %v603 = vlaneseq
    %v604 = vshrl.u32 %v603, 7
    %v605 = vsub.s32 0, %v604
    %v606 = vrot.slane %v597, %v605
    %v607 = vmul.f32 %v430, %v602
    %v608 = vmul.f32 %v432, %v606
    %v609 = vsel %vm46, %v607, 0.0
    %v610 = vsel %vm46, %v608, 0.0
    %v611 = vadd.f32 %v609, %v610
    %612 = vadd.xlane.f32.xlu0 %v611
    %v613 = vpop.xlane.xlu0 %612
    %v616 = vunpack.c.l.s4 839922192
    %v617 = vunpack.c.0.s8 %v616
    %v618 = vlaneseq
    %v619 = vshrl.u32 %v618, 7
    %v620 = vsub.s32 %v617, %v619
    %v621 = vrot.slane %v613, %v620
    %v623 = vmul.f32 %v340, %v621
    %s624 = scalar_lea.vmem [#allocation2], 8
    %625 = vst [vmem:[%s624] sm:$0xff] %v623
    // Predicated region
    $region30: #{tpu_custom_call.1} parent=1 // pred_check
      _
    $region31: #{tpu_custom_call.1} parent=1 // pred_check_branch
      %627 = sbr.rel (0) target = $region33
    $region32: #{tpu_custom_call.1} parent=1 // pred_region
      %s629 = ssub.s32 256, 256
      %630 = vsyncadd [#allocation3], %s629
      %s631 = sshll.u32 [#allocation2], 4
      %s632 = int_to_ptr.vmem [resolvable:$true] %s631
      %637 = dma.vmem_to_hbm [thread:$0]  %s632, 256, %s7, [#allocation3], 128, 128, 8
    $region33: #{tpu_custom_call.1} parent=1 // pred_fallthru
      _
    // Predicated region
    $region34: #{tpu_custom_call.1} parent=1 // pred_check
      _
    $region35: #{tpu_custom_call.1} parent=1 // pred_check_branch
      %639 = sbr.rel (0) target = $region37
    $region36: #{tpu_custom_call.1} parent=1 // pred_region
      %640 = dma.done [#allocation3], 256
    $region37: #{tpu_custom_call.1} parent=1 // pred_fallthru
      _
    %641 = vsyncpa [#allocation3], 1

</llo_original>
